<compile_context>
chip_gen: v6e
topology: v6e:2x2x1
jax: 0.10.0
libtpu: 0.0.40
codegen_flags: <defaults>
</compile_context>

<pallas_src>
import jax
import jax.numpy as jnp
from jax.experimental import pallas as pl
from jax.experimental.pallas import tpu as pltpu

LN_EPS = 1e-5            # PyTorch nn.LayerNorm default
_MAX_BATCH_TILE = 4096   # keep <= 4096 for v7x (64 MiB VMEM); 8192 is fine on
                         # v5e/v6e (128 MiB) if sweeping per-generation.


def _round_up(n, m):
    return (n + m - 1) // m * m


def _pick_batch_tile(B):
    """Batch rows per grid step.

    * B <= 256: a single full-array block (no padding, no ragged reads).
    * Larger B: TB is a multiple of 128 (lane-dense output stores / aligned
      DMAs), capped so G >= 2 — on v7x both TensorCores get work via the
      "parallel" batch axis.  Capped at _MAX_BATCH_TILE for VMEM portability.
    """
    if B <= 256:
        return B
    half = _round_up((B + 1) // 2, 128)
    return min(_MAX_BATCH_TILE, half)


def _layernorm_feat(h, gamma, beta):
    """LayerNorm over the feature axis 0 of an (F, TB) f32 tile.

    One-pass variance mean(h^2) - mean(h)^2 (clamped against cancellation);
    rsqrt goes to the EUP slot.  All arithmetic stays f32 (v5e-safe).
    """
    m = jnp.mean(h, axis=0, keepdims=True)
    m2 = jnp.mean(h * h, axis=0, keepdims=True)
    var = jnp.maximum(m2 - m * m, 0.0)
    inv = jax.lax.rsqrt(var + LN_EPS)
    return (h - m) * inv * gamma + beta


def tpa_head_kernel(
    x_ref,
    w1_ref, b1_ref, g1_ref, be1_ref,
    w2_ref, b2_ref, g2_ref, be2_ref,
    w3_ref, b3_ref, g3_ref, be3_ref,
    w4_ref, b4_ref,
    out_ref,
):
    # In-kernel bf16 cast of the batch tile (x already resident in VMEM):
    # near-free VPU op, and the wrapper never touches x in HBM.
    x = x_ref[...].astype(jnp.bfloat16)                          # (TB, IN)

    # Block 1 (transposed): h1^T = W1 @ x^T -> (H, TB), batch on the 128-lane
    # axis.  dot_general contracts both operands on their minor dim, folding
    # the layout change into the MXU op.
    h = jax.lax.dot_general(
        w1_ref[...], x,
        dimension_numbers=(((1,), (1,)), ((), ())),
        preferred_element_type=jnp.float32,
    ) + b1_ref[...]                                              # (H, TB) f32
    h = _layernorm_feat(h, g1_ref[...], be1_ref[...])
    h = jnp.maximum(h, 0.0)
    # TODO(synk): training-mode dropout (p=0.3) not implemented (eval identity).

    # Block 2: (H2, H) @ (H, TB) -> (H2, TB); bf16 operands, f32 accumulate.
    h = jnp.dot(w2_ref[...], h.astype(jnp.bfloat16),
                preferred_element_type=jnp.float32) + b2_ref[...]
    h = _layernorm_feat(h, g2_ref[...], be2_ref[...])
    h = jnp.maximum(h, 0.0)
    # TODO(synk): training-mode dropout (p=0.2) not implemented (eval identity).

    # Block 3: (H4, H2) @ (H2, TB) -> (H4, TB).
    h = jnp.dot(w3_ref[...], h.astype(jnp.bfloat16),
                preferred_element_type=jnp.float32) + b3_ref[...]
    h = _layernorm_feat(h, g3_ref[...], be3_ref[...])
    h = jnp.maximum(h, 0.0)                                      # (H4, TB) f32

    # Final Linear(H4 -> 1): (1, H4) @ (H4, TB) -> (1, TB).  Already
    # lane-dense in this layout -> full vector stores on writeback.
    scores = jnp.dot(w4_ref[...], h.astype(jnp.bfloat16),
                     preferred_element_type=jnp.float32) + b4_ref[...]
    out_ref[0] = scores.astype(out_ref.dtype)                    # (1, TB) view


@jax.jit
def tpa_prediction_head(x, params):
    (w1, b1, g1, be1,
     w2, b2, g2, be2,
     w3, b3, g3, be3,
     w4, b4) = params

    B, F = x.shape
    TB = _pick_batch_tile(B)
    G = -(-B // TB)   # cdiv; last block may be ragged (no jnp.pad copy of x)

    # Weights are tiny: wrapper-side bf16 casts are negligible HBM traffic.
    # x (the dominant stream) is NOT touched here — it is cast in the kernel.
    w1 = w1.astype(jnp.bfloat16)
    w2 = w2.astype(jnp.bfloat16)
    w3 = w3.astype(jnp.bfloat16)
    w4 = w4.astype(jnp.bfloat16)

    args = (x,
            w1, b1, g1, be1,
            w2, b2, g2, be2,
            w3, b3, g3, be3,
            w4, b4)

    # x / out tiles vary with the grid step (default double-buffering is
    # intentional); weights & LN params use constant index maps and stay
    # VMEM-resident across steps.
    x_spec = pl.BlockSpec((TB, F), lambda i: (i, 0))
    param_specs = [pl.BlockSpec(p.shape, lambda i: (0, 0)) for p in args[1:]]
    out_spec = pl.BlockSpec((1, 1, TB), lambda i: (i, 0, 0))

    out = pl.pallas_call(
        tpa_head_kernel,
        out_shape=jax.ShapeDtypeStruct((G, 1, TB), jnp.float32),
        grid=(G,),
        in_specs=[x_spec] + param_specs,
        out_specs=out_spec,
        compiler_params=pltpu.CompilerParams(
            # Batch axis is embarrassingly parallel -> shard across the two
            # v7x TensorCores (no effect on v5e/v6e, 1 TC).
            dimension_semantics=("parallel",),
            # Transposed layout keeps the per-step working set to a few MiB at
            # TB=4096, so 32 MiB is safe on every generation incl. v7x.
            vmem_limit_bytes=32 * 1024 * 1024,
        ),
    )(*args)

    # (G, 1, TB) -> (G*TB, 1); drop rows from a ragged final block (if any).
    return out.reshape(G * TB, 1)[:B]


def init_params(key, input_dim, hidden_dim):
    """Synthetic init matching the PyTorch module's shapes.

    Linear weights in PyTorch-native (out_features, in_features) layout —
    exactly what the transposed kernel consumes.  Biases / LayerNorm params
    stored as (dim, 1) columns (batch lives on the lane axis in-kernel).
    Linear: U(-1/sqrt(fan_in), 1/sqrt(fan_in)); LayerNorm: gamma=1, beta=0.
    """
    dims = [input_dim, hidden_dim, hidden_dim // 2, hidden_dim // 4, 1]
    params = []
    keys = iter(jax.random.split(key, 8))
    for li in range(4):
        fan_in, fan_out = dims[li], dims[li + 1]
        bound = 1.0 / (fan_in ** 0.5)
        w = jax.random.uniform(next(keys), (fan_out, fan_in), jnp.float32,
                               minval=-bound, maxval=bound)
        b = jax.random.uniform(next(keys), (fan_out, 1), jnp.float32,
                               minval=-bound, maxval=bound)
        params += [w, b]
        if li < 3:
            params += [jnp.ones((fan_out, 1), jnp.float32),
                       jnp.zeros((fan_out, 1), jnp.float32)]
    return tuple(params)


def reference_forward(x, params):
    """Pure-JAX reference mirroring the kernel math (bf16 dot operands,
    f32 accumulation, f32 LayerNorm/ReLU)."""
    (w1, b1, g1, be1,
     w2, b2, g2, be2,
     w3, b3, g3, be3,
     w4, b4) = params

    def ln(h, g, b):
        m = jnp.mean(h, axis=-1, keepdims=True)
        v = jnp.maximum(jnp.mean(h * h, axis=-1, keepdims=True) - m * m, 0.0)
        return (h - m) * jax.lax.rsqrt(v + LN_EPS) * g.reshape(1, -1) + b.reshape(1, -1)

    h = jnp.dot(x.astype(jnp.bfloat16), w1.astype(jnp.bfloat16).T,
                preferred_element_type=jnp.float32) + b1.reshape(1, -1)
    h = jnp.maximum(ln(h, g1, be1), 0.0)
    h = jnp.dot(h.astype(jnp.bfloat16), w2.astype(jnp.bfloat16).T,
                preferred_element_type=jnp.float32) + b2.reshape(1, -1)
    h = jnp.maximum(ln(h, g2, be2), 0.0)
    h = jnp.dot(h.astype(jnp.bfloat16), w3.astype(jnp.bfloat16).T,
                preferred_element_type=jnp.float32) + b3.reshape(1, -1)
    h = jnp.maximum(ln(h, g3, be3), 0.0)
    return jnp.dot(h.astype(jnp.bfloat16), w4.astype(jnp.bfloat16).T,
                   preferred_element_type=jnp.float32) + b4.reshape(1, -1)   # (B, 1)


if __name__ == "__main__":
    INPUT_DIM, HIDDEN_DIM = 32, 32   # hidden//2 = 16, hidden//4 = 8

    key = jax.random.PRNGKey(0)
    kx, kp = jax.random.split(key)
    params = init_params(kp, INPUT_DIM, HIDDEN_DIM)

    # B=8   -> single full-array block (TB = B, G = 1)
    # B=512 -> TB = 256, G = 2 (multi-step grid / megacore-parallel path)
    for B in (8, 512):
        x = jax.random.normal(jax.random.fold_in(kx, B), (B, INPUT_DIM), jnp.float32)
        out = jax.block_until_ready(tpa_prediction_head(x, params))
        ref = reference_forward(x, params)
        assert out.shape == (B, 1), f"bad output shape at B={B}: {out.shape}"
        assert jnp.allclose(out, ref, atol=1e-2, rtol=1e-2), f"mismatch vs JAX reference at B={B}"

    print("KERNEL_OK")
</pallas_src>

<mosaic_0001>
module attributes {stable_mosaic.version = 11 : i64} {
  func.func @tpa_head_kernel(%arg0: i32, %arg1: memref<8x32xf32, #tpu.memory_space<vmem>>, %arg2: memref<32x32xbf16, #tpu.memory_space<vmem>>, %arg3: memref<32x1xf32, #tpu.memory_space<vmem>>, %arg4: memref<32x1xf32, #tpu.memory_space<vmem>>, %arg5: memref<32x1xf32, #tpu.memory_space<vmem>>, %arg6: memref<16x32xbf16, #tpu.memory_space<vmem>>, %arg7: memref<16x1xf32, #tpu.memory_space<vmem>>, %arg8: memref<16x1xf32, #tpu.memory_space<vmem>>, %arg9: memref<16x1xf32, #tpu.memory_space<vmem>>, %arg10: memref<8x16xbf16, #tpu.memory_space<vmem>>, %arg11: memref<8x1xf32, #tpu.memory_space<vmem>>, %arg12: memref<8x1xf32, #tpu.memory_space<vmem>>, %arg13: memref<8x1xf32, #tpu.memory_space<vmem>>, %arg14: memref<1x8xbf16, #tpu.memory_space<vmem>>, %arg15: memref<1x1xf32, #tpu.memory_space<vmem>>, %arg16: memref<1x1x8xf32, #tpu.memory_space<vmem>>) attributes {dimension_semantics = [#tpu.dimension_semantics<parallel>], iteration_bounds = array<i64: 1>, scalar_prefetch = 0 : i64, scratch_operands = 0 : i64, tpu.core_type = #tpu.core_type<tc>, window_params = [{transform_indices = @transform_0, window_bounds = array<i64: 8, 32>}, {pipeline_mode = #tpu.pipeline_mode<synchronous>, transform_indices = @transform_1, window_bounds = array<i64: 32, 32>}, {pipeline_mode = #tpu.pipeline_mode<synchronous>, transform_indices = @transform_2, window_bounds = array<i64: 32, 1>}, {pipeline_mode = #tpu.pipeline_mode<synchronous>, transform_indices = @transform_3, window_bounds = array<i64: 32, 1>}, {pipeline_mode = #tpu.pipeline_mode<synchronous>, transform_indices = @transform_4, window_bounds = array<i64: 32, 1>}, {pipeline_mode = #tpu.pipeline_mode<synchronous>, transform_indices = @transform_5, window_bounds = array<i64: 16, 32>}, {pipeline_mode = #tpu.pipeline_mode<synchronous>, transform_indices = @transform_6, window_bounds = array<i64: 16, 1>}, {pipeline_mode = #tpu.pipeline_mode<synchronous>, transform_indices = @transform_7, window_bounds = array<i64: 16, 1>}, {pipeline_mode = #tpu.pipeline_mode<synchronous>, transform_indices = @transform_8, window_bounds = array<i64: 16, 1>}, {pipeline_mode = #tpu.pipeline_mode<synchronous>, transform_indices = @transform_9, window_bounds = array<i64: 8, 16>}, {pipeline_mode = #tpu.pipeline_mode<synchronous>, transform_indices = @transform_10, window_bounds = array<i64: 8, 1>}, {pipeline_mode = #tpu.pipeline_mode<synchronous>, transform_indices = @transform_11, window_bounds = array<i64: 8, 1>}, {pipeline_mode = #tpu.pipeline_mode<synchronous>, transform_indices = @transform_12, window_bounds = array<i64: 8, 1>}, {pipeline_mode = #tpu.pipeline_mode<synchronous>, transform_indices = @transform_13, window_bounds = array<i64: 1, 8>}, {pipeline_mode = #tpu.pipeline_mode<synchronous>, transform_indices = @transform_14, window_bounds = array<i64: 1, 1>}, {transform_indices = @transform_15, window_bounds = array<i64: 1, 1, 8>}]} {
    %c0 = arith.constant 0 : index
    %c0_0 = arith.constant 0 : index
    %0 = vector.load %arg1[%c0, %c0_0] : memref<8x32xf32, #tpu.memory_space<vmem>>, vector<8x32xf32>
    %1 = arith.truncf %0 : vector<8x32xf32> to vector<8x32xbf16>
    %c0_1 = arith.constant 0 : index
    %c0_2 = arith.constant 0 : index
    %2 = vector.load %arg2[%c0_1, %c0_2] : memref<32x32xbf16, #tpu.memory_space<vmem>>, vector<32x32xbf16>
    %cst = arith.constant dense<0.000000e+00> : vector<32x8xf32>
    %3 = tpu.matmul %2, %1, %cst {dimension_numbers = #tpu.dot_dimension_numbers<[1], [1], [0], [0], [0, 0, 1, 0], [], []>} : vector<32x32xbf16>, vector<8x32xbf16>, vector<32x8xf32> -> vector<32x8xf32>
    %c0_3 = arith.constant 0 : index
    %c0_4 = arith.constant 0 : index
    %4 = vector.load %arg3[%c0_3, %c0_4] : memref<32x1xf32, #tpu.memory_space<vmem>>, vector<32x1xf32>
    %5 = vector.broadcast %4 : vector<32x1xf32> to vector<32x8xf32>
    %6 = arith.addf %3, %5 : vector<32x8xf32>
    %c0_5 = arith.constant 0 : index
    %c0_6 = arith.constant 0 : index
    %7 = vector.load %arg4[%c0_5, %c0_6] : memref<32x1xf32, #tpu.memory_space<vmem>>, vector<32x1xf32>
    %c0_7 = arith.constant 0 : index
    %c0_8 = arith.constant 0 : index
    %8 = vector.load %arg5[%c0_7, %c0_8] : memref<32x1xf32, #tpu.memory_space<vmem>>, vector<32x1xf32>
    %cst_9 = arith.constant dense<0.000000e+00> : vector<8xf32>
    %9 = vector.multi_reduction <add>, %6, %cst_9 [0] : vector<32x8xf32> to vector<8xf32>
    %10 = vector.shape_cast %9 : vector<8xf32> to vector<1x8xf32>
    %cst_10 = arith.constant 3.200000e+01 : f32
    %11 = vector.broadcast %cst_10 : f32 to vector<1x8xf32>
    %12 = arith.divf %10, %11 : vector<1x8xf32>
    %13 = arith.mulf %6, %6 : vector<32x8xf32>
    %cst_11 = arith.constant dense<0.000000e+00> : vector<8xf32>
    %14 = vector.multi_reduction <add>, %13, %cst_11 [0] : vector<32x8xf32> to vector<8xf32>
    %15 = vector.shape_cast %14 : vector<8xf32> to vector<1x8xf32>
    %cst_12 = arith.constant 3.200000e+01 : f32
    %16 = vector.broadcast %cst_12 : f32 to vector<1x8xf32>
    %17 = arith.divf %15, %16 : vector<1x8xf32>
    %18 = arith.mulf %12, %12 : vector<1x8xf32>
    %19 = arith.subf %17, %18 : vector<1x8xf32>
    %cst_13 = arith.constant 0.000000e+00 : f32
    %20 = vector.broadcast %cst_13 : f32 to vector<1x8xf32>
    %21 = arith.maximumf %19, %20 : vector<1x8xf32>
    %cst_14 = arith.constant 9.99999974E-6 : f32
    %22 = vector.broadcast %cst_14 : f32 to vector<1x8xf32>
    %23 = arith.addf %21, %22 : vector<1x8xf32>
    %24 = math.rsqrt %23 : vector<1x8xf32>
    %25 = vector.broadcast %12 : vector<1x8xf32> to vector<32x8xf32>
    %26 = arith.subf %6, %25 : vector<32x8xf32>
    %27 = vector.broadcast %24 : vector<1x8xf32> to vector<32x8xf32>
    %28 = arith.mulf %26, %27 : vector<32x8xf32>
    %29 = vector.broadcast %7 : vector<32x1xf32> to vector<32x8xf32>
    %30 = arith.mulf %28, %29 : vector<32x8xf32>
    %31 = vector.broadcast %8 : vector<32x1xf32> to vector<32x8xf32>
    %32 = arith.addf %30, %31 : vector<32x8xf32>
    %cst_15 = arith.constant 0.000000e+00 : f32
    %33 = vector.broadcast %cst_15 : f32 to vector<32x8xf32>
    %34 = arith.maximumf %32, %33 : vector<32x8xf32>
    %c0_16 = arith.constant 0 : index
    %c0_17 = arith.constant 0 : index
    %35 = vector.load %arg6[%c0_16, %c0_17] : memref<16x32xbf16, #tpu.memory_space<vmem>>, vector<16x32xbf16>
    %36 = arith.truncf %34 : vector<32x8xf32> to vector<32x8xbf16>
    %cst_18 = arith.constant dense<0.000000e+00> : vector<16x8xf32>
    %37 = tpu.matmul %35, %36, %cst_18 {dimension_numbers = #tpu.dot_dimension_numbers<[1], [0], [0], [1], [0, 0, 1, 1], [], []>} : vector<16x32xbf16>, vector<32x8xbf16>, vector<16x8xf32> -> vector<16x8xf32>
    %c0_19 = arith.constant 0 : index
    %c0_20 = arith.constant 0 : index
    %38 = vector.load %arg7[%c0_19, %c0_20] : memref<16x1xf32, #tpu.memory_space<vmem>>, vector<16x1xf32>
    %39 = vector.broadcast %38 : vector<16x1xf32> to vector<16x8xf32>
    %40 = arith.addf %37, %39 : vector<16x8xf32>
    %c0_21 = arith.constant 0 : index
    %c0_22 = arith.constant 0 : index
    %41 = vector.load %arg8[%c0_21, %c0_22] : memref<16x1xf32, #tpu.memory_space<vmem>>, vector<16x1xf32>
    %c0_23 = arith.constant 0 : index
    %c0_24 = arith.constant 0 : index
    %42 = vector.load %arg9[%c0_23, %c0_24] : memref<16x1xf32, #tpu.memory_space<vmem>>, vector<16x1xf32>
    %cst_25 = arith.constant dense<0.000000e+00> : vector<8xf32>
    %43 = vector.multi_reduction <add>, %40, %cst_25 [0] : vector<16x8xf32> to vector<8xf32>
    %44 = vector.shape_cast %43 : vector<8xf32> to vector<1x8xf32>
    %cst_26 = arith.constant 1.600000e+01 : f32
    %45 = vector.broadcast %cst_26 : f32 to vector<1x8xf32>
    %46 = arith.divf %44, %45 : vector<1x8xf32>
    %47 = arith.mulf %40, %40 : vector<16x8xf32>
    %cst_27 = arith.constant dense<0.000000e+00> : vector<8xf32>
    %48 = vector.multi_reduction <add>, %47, %cst_27 [0] : vector<16x8xf32> to vector<8xf32>
    %49 = vector.shape_cast %48 : vector<8xf32> to vector<1x8xf32>
    %cst_28 = arith.constant 1.600000e+01 : f32
    %50 = vector.broadcast %cst_28 : f32 to vector<1x8xf32>
    %51 = arith.divf %49, %50 : vector<1x8xf32>
    %52 = arith.mulf %46, %46 : vector<1x8xf32>
    %53 = arith.subf %51, %52 : vector<1x8xf32>
    %cst_29 = arith.constant 0.000000e+00 : f32
    %54 = vector.broadcast %cst_29 : f32 to vector<1x8xf32>
    %55 = arith.maximumf %53, %54 : vector<1x8xf32>
    %cst_30 = arith.constant 9.99999974E-6 : f32
    %56 = vector.broadcast %cst_30 : f32 to vector<1x8xf32>
    %57 = arith.addf %55, %56 : vector<1x8xf32>
    %58 = math.rsqrt %57 : vector<1x8xf32>
    %59 = vector.broadcast %46 : vector<1x8xf32> to vector<16x8xf32>
    %60 = arith.subf %40, %59 : vector<16x8xf32>
    %61 = vector.broadcast %58 : vector<1x8xf32> to vector<16x8xf32>
    %62 = arith.mulf %60, %61 : vector<16x8xf32>
    %63 = vector.broadcast %41 : vector<16x1xf32> to vector<16x8xf32>
    %64 = arith.mulf %62, %63 : vector<16x8xf32>
    %65 = vector.broadcast %42 : vector<16x1xf32> to vector<16x8xf32>
    %66 = arith.addf %64, %65 : vector<16x8xf32>
    %cst_31 = arith.constant 0.000000e+00 : f32
    %67 = vector.broadcast %cst_31 : f32 to vector<16x8xf32>
    %68 = arith.maximumf %66, %67 : vector<16x8xf32>
    %c0_32 = arith.constant 0 : index
    %c0_33 = arith.constant 0 : index
    %69 = vector.load %arg10[%c0_32, %c0_33] : memref<8x16xbf16, #tpu.memory_space<vmem>>, vector<8x16xbf16>
    %70 = arith.truncf %68 : vector<16x8xf32> to vector<16x8xbf16>
    %cst_34 = arith.constant dense<0.000000e+00> : vector<8x8xf32>
    %71 = tpu.matmul %69, %70, %cst_34 {dimension_numbers = #tpu.dot_dimension_numbers<[1], [0], [0], [1], [0, 0, 1, 1], [], []>} : vector<8x16xbf16>, vector<16x8xbf16>, vector<8x8xf32> -> vector<8x8xf32>
    %c0_35 = arith.constant 0 : index
    %c0_36 = arith.constant 0 : index
    %72 = vector.load %arg11[%c0_35, %c0_36] : memref<8x1xf32, #tpu.memory_space<vmem>>, vector<8x1xf32>
    %73 = vector.broadcast %72 : vector<8x1xf32> to vector<8x8xf32>
    %74 = arith.addf %71, %73 : vector<8x8xf32>
    %c0_37 = arith.constant 0 : index
    %c0_38 = arith.constant 0 : index
    %75 = vector.load %arg12[%c0_37, %c0_38] : memref<8x1xf32, #tpu.memory_space<vmem>>, vector<8x1xf32>
    %c0_39 = arith.constant 0 : index
    %c0_40 = arith.constant 0 : index
    %76 = vector.load %arg13[%c0_39, %c0_40] : memref<8x1xf32, #tpu.memory_space<vmem>>, vector<8x1xf32>
    %cst_41 = arith.constant dense<0.000000e+00> : vector<8xf32>
    %77 = vector.multi_reduction <add>, %74, %cst_41 [0] : vector<8x8xf32> to vector<8xf32>
    %78 = vector.shape_cast %77 : vector<8xf32> to vector<1x8xf32>
    %cst_42 = arith.constant 8.000000e+00 : f32
    %79 = vector.broadcast %cst_42 : f32 to vector<1x8xf32>
    %80 = arith.divf %78, %79 : vector<1x8xf32>
    %81 = arith.mulf %74, %74 : vector<8x8xf32>
    %cst_43 = arith.constant dense<0.000000e+00> : vector<8xf32>
    %82 = vector.multi_reduction <add>, %81, %cst_43 [0] : vector<8x8xf32> to vector<8xf32>
    %83 = vector.shape_cast %82 : vector<8xf32> to vector<1x8xf32>
    %cst_44 = arith.constant 8.000000e+00 : f32
    %84 = vector.broadcast %cst_44 : f32 to vector<1x8xf32>
    %85 = arith.divf %83, %84 : vector<1x8xf32>
    %86 = arith.mulf %80, %80 : vector<1x8xf32>
    %87 = arith.subf %85, %86 : vector<1x8xf32>
    %cst_45 = arith.constant 0.000000e+00 : f32
    %88 = vector.broadcast %cst_45 : f32 to vector<1x8xf32>
    %89 = arith.maximumf %87, %88 : vector<1x8xf32>
    %cst_46 = arith.constant 9.99999974E-6 : f32
    %90 = vector.broadcast %cst_46 : f32 to vector<1x8xf32>
    %91 = arith.addf %89, %90 : vector<1x8xf32>
    %92 = math.rsqrt %91 : vector<1x8xf32>
    %93 = vector.broadcast %80 : vector<1x8xf32> to vector<8x8xf32>
    %94 = arith.subf %74, %93 : vector<8x8xf32>
    %95 = vector.broadcast %92 : vector<1x8xf32> to vector<8x8xf32>
    %96 = arith.mulf %94, %95 : vector<8x8xf32>
    %97 = vector.broadcast %75 : vector<8x1xf32> to vector<8x8xf32>
    %98 = arith.mulf %96, %97 : vector<8x8xf32>
    %99 = vector.broadcast %76 : vector<8x1xf32> to vector<8x8xf32>
    %100 = arith.addf %98, %99 : vector<8x8xf32>
    %cst_47 = arith.constant 0.000000e+00 : f32
    %101 = vector.broadcast %cst_47 : f32 to vector<8x8xf32>
    %102 = arith.maximumf %100, %101 : vector<8x8xf32>
    %c0_48 = arith.constant 0 : index
    %c0_49 = arith.constant 0 : index
    %103 = vector.load %arg14[%c0_48, %c0_49] : memref<1x8xbf16, #tpu.memory_space<vmem>>, vector<1x8xbf16>
    %104 = arith.truncf %102 : vector<8x8xf32> to vector<8x8xbf16>
    %cst_50 = arith.constant dense<0.000000e+00> : vector<1x8xf32>
    %105 = tpu.matmul %103, %104, %cst_50 {dimension_numbers = #tpu.dot_dimension_numbers<[1], [0], [0], [1], [0, 0, 1, 1], [], []>} : vector<1x8xbf16>, vector<8x8xbf16>, vector<1x8xf32> -> vector<1x8xf32>
    %c0_51 = arith.constant 0 : index
    %c0_52 = arith.constant 0 : index
    %106 = vector.load %arg15[%c0_51, %c0_52] : memref<1x1xf32, #tpu.memory_space<vmem>>, vector<1x1xf32>
    %107 = vector.broadcast %106 : vector<1x1xf32> to vector<1x8xf32>
    %108 = arith.addf %105, %107 : vector<1x8xf32>
    %c0_53 = arith.constant 0 : index
    %c0_54 = arith.constant 0 : index
    %c0_55 = arith.constant 0 : index
    %109 = vector.load %arg16[%c0_53, %c0_54, %c0_55] : memref<1x1x8xf32, #tpu.memory_space<vmem>>, vector<1x1x8xf32>
    %110 = vector.shape_cast %109 : vector<1x1x8xf32> to vector<1x8xf32>
    %111 = vector.shape_cast %108 : vector<1x8xf32> to vector<1x1x8xf32>
    tpu.vector_store %arg16[%c0_53, %c0_54, %c0_55], %111 {strides = array<i32>} : memref<1x1x8xf32, #tpu.memory_space<vmem>>, vector<1x1x8xf32>,
    return
  }
  func.func @transform_0(%arg0: i32) -> (i32, i32) {
    %c0_i32 = arith.constant 0 : i32
    %c0_i32_0 = arith.constant 0 : i32
    return %arg0, %c0_i32 : i32, i32
  }
  func.func @transform_1(%arg0: i32) -> (i32, i32) {
    %c0_i32 = arith.constant 0 : i32
    %c0_i32_0 = arith.constant 0 : i32
    %c0_i32_1 = arith.constant 0 : i32
    return %c0_i32, %c0_i32_0 : i32, i32
  }
  func.func @transform_2(%arg0: i32) -> (i32, i32) {
    %c0_i32 = arith.constant 0 : i32
    %c0_i32_0 = arith.constant 0 : i32
    %c0_i32_1 = arith.constant 0 : i32
    return %c0_i32, %c0_i32_0 : i32, i32
  }
  func.func @transform_3(%arg0: i32) -> (i32, i32) {
    %c0_i32 = arith.constant 0 : i32
    %c0_i32_0 = arith.constant 0 : i32
    %c0_i32_1 = arith.constant 0 : i32
    return %c0_i32, %c0_i32_0 : i32, i32
  }
  func.func @transform_4(%arg0: i32) -> (i32, i32) {
    %c0_i32 = arith.constant 0 : i32
    %c0_i32_0 = arith.constant 0 : i32
    %c0_i32_1 = arith.constant 0 : i32
    return %c0_i32, %c0_i32_0 : i32, i32
  }
  func.func @transform_5(%arg0: i32) -> (i32, i32) {
    %c0_i32 = arith.constant 0 : i32
    %c0_i32_0 = arith.constant 0 : i32
    %c0_i32_1 = arith.constant 0 : i32
    return %c0_i32, %c0_i32_0 : i32, i32
  }
  func.func @transform_6(%arg0: i32) -> (i32, i32) {
    %c0_i32 = arith.constant 0 : i32
    %c0_i32_0 = arith.constant 0 : i32
    %c0_i32_1 = arith.constant 0 : i32
    return %c0_i32, %c0_i32_0 : i32, i32
  }
  func.func @transform_7(%arg0: i32) -> (i32, i32) {
    %c0_i32 = arith.constant 0 : i32
    %c0_i32_0 = arith.constant 0 : i32
    %c0_i32_1 = arith.constant 0 : i32
    return %c0_i32, %c0_i32_0 : i32, i32
  }
  func.func @transform_8(%arg0: i32) -> (i32, i32) {
    %c0_i32 = arith.constant 0 : i32
    %c0_i32_0 = arith.constant 0 : i32
    %c0_i32_1 = arith.constant 0 : i32
    return %c0_i32, %c0_i32_0 : i32, i32
  }
  func.func @transform_9(%arg0: i32) -> (i32, i32) {
    %c0_i32 = arith.constant 0 : i32
    %c0_i32_0 = arith.constant 0 : i32
    %c0_i32_1 = arith.constant 0 : i32
    return %c0_i32, %c0_i32_0 : i32, i32
  }
  func.func @transform_10(%arg0: i32) -> (i32, i32) {
    %c0_i32 = arith.constant 0 : i32
    %c0_i32_0 = arith.constant 0 : i32
    %c0_i32_1 = arith.constant 0 : i32
    return %c0_i32, %c0_i32_0 : i32, i32
  }
  func.func @transform_11(%arg0: i32) -> (i32, i32) {
    %c0_i32 = arith.constant 0 : i32
    %c0_i32_0 = arith.constant 0 : i32
    %c0_i32_1 = arith.constant 0 : i32
    return %c0_i32, %c0_i32_0 : i32, i32
  }
  func.func @transform_12(%arg0: i32) -> (i32, i32) {
    %c0_i32 = arith.constant 0 : i32
    %c0_i32_0 = arith.constant 0 : i32
    %c0_i32_1 = arith.constant 0 : i32
    return %c0_i32, %c0_i32_0 : i32, i32
  }
  func.func @transform_13(%arg0: i32) -> (i32, i32) {
    %c0_i32 = arith.constant 0 : i32
    %c0_i32_0 = arith.constant 0 : i32
    %c0_i32_1 = arith.constant 0 : i32
    return %c0_i32, %c0_i32_0 : i32, i32
  }
  func.func @transform_14(%arg0: i32) -> (i32, i32) {
    %c0_i32 = arith.constant 0 : i32
    %c0_i32_0 = arith.constant 0 : i32
    %c0_i32_1 = arith.constant 0 : i32
    return %c0_i32, %c0_i32_0 : i32, i32
  }
  func.func @transform_15(%arg0: i32) -> (i32, i32, i32) {
    %c0_i32 = arith.constant 0 : i32
    %c0_i32_0 = arith.constant 0 : i32
    %c0_i32_1 = arith.constant 0 : i32
    return %arg0, %c0_i32, %c0_i32_0 : i32, i32, i32
  }
}

</mosaic_0001>

<llo_original>
// kernel: tpa_prediction_head.1
$region0: #{tpa_prediction_head.1}
  #allocation0 [shape = 'u32[]', space=smem, size = 0x4, offset = 0x4, fixed_abs, tag = 'smem constant byte address 0x4 - core index']
  #allocation1 [shape = 'u32[144,128]{1,0:T(1,128)}', space=vmem, size = 0x12000, scoped, tag = 'internal scratch']
  #allocation2 [shape = 'f32[1,1]{1,0:T(1,128)S(1)}', space=vmem, size = 0x200, scoped, tag = 'scoped memory for tpa_prediction_head.1']
  %s0 = inlined_call_operand.vmem [shape: f32[8,32], index: 0, kind: input, shape index: {}]
  %s1 = inlined_call_operand.vmem [shape: bf16[32,32], index: 1, kind: input, shape index: {}]
  %s2 = inlined_call_operand.vmem [shape: f32[32,1], index: 2, kind: input, shape index: {}]
  %s3 = inlined_call_operand.vmem [shape: f32[32,1], index: 3, kind: input, shape index: {}]
  %s4 = inlined_call_operand.vmem [shape: f32[32,1], index: 4, kind: input, shape index: {}]
  %s5 = inlined_call_operand.vmem [shape: bf16[16,32], index: 5, kind: input, shape index: {}]
  %s6 = inlined_call_operand.vmem [shape: f32[16,1], index: 6, kind: input, shape index: {}]
  %s7 = inlined_call_operand.vmem [shape: f32[16,1], index: 7, kind: input, shape index: {}]
  %s8 = inlined_call_operand.vmem [shape: f32[16,1], index: 8, kind: input, shape index: {}]
  %s9 = inlined_call_operand.vmem [shape: bf16[8,16], index: 9, kind: input, shape index: {}]
  %s10 = inlined_call_operand.vmem [shape: f32[8,1], index: 10, kind: input, shape index: {}]
  %s11 = inlined_call_operand.vmem [shape: f32[8,1], index: 11, kind: input, shape index: {}]
  %s12 = inlined_call_operand.vmem [shape: f32[8,1], index: 12, kind: input, shape index: {}]
  %s13 = inlined_call_operand.vmem [shape: bf16[1,8], index: 13, kind: input, shape index: {}]
  %s14 = inlined_call_operand.<no memory space> [shape: f32[1,1], index: 14, kind: input, shape index: {}]
  %s15 = inlined_call_operand.hbm [shape: f32[1,1,8], index: 15, kind: output, shape index: {}]
  %s16 = sld [smem:[#allocation0]]
  $region70: #{tpa_prediction_head.1} parent=0
    _
  %s18 = ssub.s32 1, %s16
  %s19 = scalar_select 0, %s18, %s16
  %v20 = vstv %s14
  %21 = vst [vmem:[#allocation2] sm:$0x1] %v20
  $region1: #{tpa_prediction_head.1} parent=0
    #allocation3 [shape = 'u8[512]{0}', space=vmem, size = 0x400, scoped, tag = 'output window, operand 0, single buffered']
    #allocation4 [shape = 's32[1]{0}', space=sflag, size = 0x4, scoped, tag = 'scoped memory for tpa_prediction_head.1']
    %22 = vsyncpa [#allocation4], 0
    // Predicated region
    $region2: #{tpa_prediction_head.1} parent=1 // pred_check
      _
    $region3: #{tpa_prediction_head.1} parent=1 // pred_check_branch
      %24 = sbr.rel (0) target = $region5
    $region4: #{tpa_prediction_head.1} parent=1 // pred_region
      _
    $region5: #{tpa_prediction_head.1} parent=1 // pred_fallthru
      _
    // Predicated region
    $region6: #{tpa_prediction_head.1} parent=1 // pred_check
      _
    $region7: #{tpa_prediction_head.1} parent=1 // pred_check_branch
      %26 = sbr.rel (0) target = $region9
    $region8: #{tpa_prediction_head.1} parent=1 // pred_region
      _
    $region9: #{tpa_prediction_head.1} parent=1 // pred_fallthru
      _
    // Predicated region
    $region10: #{tpa_prediction_head.1} parent=1 // pred_check
      _
    $region11: #{tpa_prediction_head.1} parent=1 // pred_check_branch
      %28 = sbr.rel (0) target = $region13
    $region12: #{tpa_prediction_head.1} parent=1 // pred_region
      _
    $region13: #{tpa_prediction_head.1} parent=1 // pred_fallthru
      _
    // Predicated region
    $region14: #{tpa_prediction_head.1} parent=1 // pred_check
      _
    $region15: #{tpa_prediction_head.1} parent=1 // pred_check_branch
      %30 = sbr.rel (0) target = $region17
    $region16: #{tpa_prediction_head.1} parent=1 // pred_region
      _
    $region17: #{tpa_prediction_head.1} parent=1 // pred_fallthru
      _
    // Predicated region
    $region18: #{tpa_prediction_head.1} parent=1 // pred_check
      _
    $region19: #{tpa_prediction_head.1} parent=1 // pred_check_branch
      %32 = sbr.rel (0) target = $region21
    $region20: #{tpa_prediction_head.1} parent=1 // pred_region
      _
    $region21: #{tpa_prediction_head.1} parent=1 // pred_fallthru
      _
    // Predicated region
    $region22: #{tpa_prediction_head.1} parent=1 // pred_check
      _
    $region23: #{tpa_prediction_head.1} parent=1 // pred_check_branch
      %34 = sbr.rel (0) target = $region25
    $region24: #{tpa_prediction_head.1} parent=1 // pred_region
      _
    $region25: #{tpa_prediction_head.1} parent=1 // pred_fallthru
      _
    // Predicated region
    $region26: #{tpa_prediction_head.1} parent=1 // pred_check
      _
    $region27: #{tpa_prediction_head.1} parent=1 // pred_check_branch
      %36 = sbr.rel (0) target = $region29
    $region28: #{tpa_prediction_head.1} parent=1 // pred_region
      _
    $region29: #{tpa_prediction_head.1} parent=1 // pred_fallthru
      _
    // Predicated region
    $region30: #{tpa_prediction_head.1} parent=1 // pred_check
      _
    $region31: #{tpa_prediction_head.1} parent=1 // pred_check_branch
      %38 = sbr.rel (0) target = $region33
    $region32: #{tpa_prediction_head.1} parent=1 // pred_region
      _
    $region33: #{tpa_prediction_head.1} parent=1 // pred_fallthru
      _
    // Predicated region
    $region34: #{tpa_prediction_head.1} parent=1 // pred_check
      _
    $region35: #{tpa_prediction_head.1} parent=1 // pred_check_branch
      %40 = sbr.rel (0) target = $region37
    $region36: #{tpa_prediction_head.1} parent=1 // pred_region
      _
    $region37: #{tpa_prediction_head.1} parent=1 // pred_fallthru
      _
    // Predicated region
    $region38: #{tpa_prediction_head.1} parent=1 // pred_check
      _
    $region39: #{tpa_prediction_head.1} parent=1 // pred_check_branch
      %42 = sbr.rel (0) target = $region41
    $region40: #{tpa_prediction_head.1} parent=1 // pred_region
      _
    $region41: #{tpa_prediction_head.1} parent=1 // pred_fallthru
      _
    // Predicated region
    $region42: #{tpa_prediction_head.1} parent=1 // pred_check
      _
    $region43: #{tpa_prediction_head.1} parent=1 // pred_check_branch
      %44 = sbr.rel (0) target = $region45
    $region44: #{tpa_prediction_head.1} parent=1 // pred_region
      _
    $region45: #{tpa_prediction_head.1} parent=1 // pred_fallthru
      _
    // Predicated region
    $region46: #{tpa_prediction_head.1} parent=1 // pred_check
      _
    $region47: #{tpa_prediction_head.1} parent=1 // pred_check_branch
      %46 = sbr.rel (0) target = $region49
    $region48: #{tpa_prediction_head.1} parent=1 // pred_region
      _
    $region49: #{tpa_prediction_head.1} parent=1 // pred_fallthru
      _
    // Predicated region
    $region50: #{tpa_prediction_head.1} parent=1 // pred_check
      _
    $region51: #{tpa_prediction_head.1} parent=1 // pred_check_branch
      %48 = sbr.rel (0) target = $region53
    $region52: #{tpa_prediction_head.1} parent=1 // pred_region
      _
    $region53: #{tpa_prediction_head.1} parent=1 // pred_fallthru
      _
    // Predicated region
    $region54: #{tpa_prediction_head.1} parent=1 // pred_check
      _
    $region55: #{tpa_prediction_head.1} parent=1 // pred_check_branch
      %50 = sbr.rel (0) target = $region57
    $region56: #{tpa_prediction_head.1} parent=1 // pred_region
      _
    $region57: #{tpa_prediction_head.1} parent=1 // pred_fallthru
      _
    // Predicated region
    $region58: #{tpa_prediction_head.1} parent=1 // pred_check
      _
    $region59: #{tpa_prediction_head.1} parent=1 // pred_check_branch
      %52 = sbr.rel (0) target = $region61
    $region60: #{tpa_prediction_head.1} parent=1 // pred_region
      _
    $region61: #{tpa_prediction_head.1} parent=1 // pred_fallthru
      _
    %v54 = vld [vmem:[%s0] sm:$0xff]
    %v55 = vpack.c.bf16 %v54, %v54
    %v56 = vld [vmem:[%s1] sm:$0xf]
    %v57 = vld [vmem:[%s1 + $0x4] sm:$0xf]
    %v58 = vld [vmem:[%s1 + $0x8] sm:$0xf]
    %v59 = vld [vmem:[%s1 + $0xc] sm:$0xf]
    %v60 = vld [vmem:[%s2] sm:$0xff]
    %v61 = vld [vmem:[%s2 + $0x8] sm:$0xff]
    %v62 = vld [vmem:[%s2 + $0x10] sm:$0xff]
    %v63 = vld [vmem:[%s2 + $0x18] sm:$0xff]
    %65 = vset.pattern.permute.xlu0 0
    %66 = vperm.xlu0 %65, %v60
    %v67 = vpop.permute.xlu0 %66
    %70 = vset.pattern.permute.xlu0 0
    %71 = vperm.xlu0 %70, %v61
    %v72 = vpop.permute.xlu0 %71
    %75 = vset.pattern.permute.xlu0 0
    %76 = vperm.xlu0 %75, %v62
    %v77 = vpop.permute.xlu0 %76
    %80 = vset.pattern.permute.xlu0 0
    %81 = vperm.xlu0 %80, %v63
    %v82 = vpop.permute.xlu0 %81
    %v88 = vunpack.c.l.b16 %v56
    %v89 = vunpack.c.l.b16 %v57
    %v90 = vunpack.c.l.b16 %v58
    %v91 = vunpack.c.l.b16 %v59
    %v92 = vpack.c.b16 %v89, %v88
    %v93 = vpack.c.b16 %v91, %v90
    %vm94 = vcmask 261120
    %v96 = vsel %vm94, %v92, 0
    %v99 = vsel %vm94, %v93, 0
    %v102 = vsel %vm94, %v55, 0
    %104 = vmatprep.subr.bf16.mxu0 0
    %105 = vmatpush1.bf16.xpose.msra.mxu0 0
    %106 = vmatprep.subr.bf16.mxu0 0
    %107 = vmatpush1.bf16.xpose.msra.mxu0 0
    %108 = vmatprep.subr.bf16.mxu0 0
    %109 = vmatpush1.bf16.xpose.msra.mxu0 0
    %110 = vmatprep.subr.bf16.mxu0 0
    %111 = vmatpush1.bf16.xpose.msra.mxu0 0
    %112 = vmatprep.subr.bf16.mxu0 0
    %113 = vmatpush1.bf16.xpose.msra.mxu0 0
    %114 = vmatprep.subr.bf16.mxu0 0
    %115 = vmatpush1.bf16.xpose.msra.mxu0 0
    %116 = vmatprep.subr.bf16.mxu0 0
    %117 = vmatpush1.bf16.xpose.msra.mxu0 0
    %118 = vmatprep.subr.bf16.mxu0 0
    %119 = vmatpush1.bf16.xpose.msra.mxu0 %v102
    %120 = vmatprep.subr.bf16.mxu0 0
    %121 = vmatpush2.bf16.xpose.msra.mxu0 0
    %122 = vmatprep.subr.bf16.mxu0 0
    %123 = vmatpush2.bf16.xpose.msra.mxu0 0
    %124 = vmatprep.subr.bf16.mxu0 0
    %125 = vmatpush2.bf16.xpose.msra.mxu0 0
    %126 = vmatprep.subr.bf16.mxu0 0
    %127 = vmatpush2.bf16.xpose.msra.mxu0 0
    %128 = vmatprep.subr.bf16.mxu0 0
    %129 = vmatpush2.bf16.xpose.msra.mxu0 0
    %130 = vmatprep.subr.bf16.mxu0 0
    %131 = vmatpush2.bf16.xpose.msra.mxu0 0
    %132 = vmatprep.subr.bf16.mxu0 0
    %133 = vmatpush2.bf16.xpose.msra.mxu0 0
    %134 = vmatprep.subr.bf16.mxu0 0
    %135 = vmatpush2.bf16.xpose.msra.mxu0 0
    %136 = vmatprep.mubr.bf16.mxu0 0
    %137 = vmatmul.mubr.bf16.gmra.mxu0 %v96
    %v138 = vpop.f32.mrf.mxu0
    %v139 = vadd.f32 %v67, %v138
    %v140 = vpop.f32.mrf.mxu0
    %v141 = vpop.f32.mrf.mxu0
    %v142 = vadd.f32 %v72, %v141
    %v143 = vpop.f32.mrf.mxu0
    %144 = vmatprep.mubr.bf16.mxu0 0
    %145 = vmatmul.mubr.bf16.gmra.mxu0 %v99
    %v146 = vpop.f32.mrf.mxu0
    %v147 = vadd.f32 %v77, %v146
    %v148 = vpop.f32.mrf.mxu0
    %v149 = vpop.f32.mrf.mxu0
    %v150 = vadd.f32 %v82, %v149
    %v151 = vpop.f32.mrf.mxu0
    %152 = vdwg.mxu0
    %v153 = vld [vmem:[%s3] sm:$0xff]
    %v154 = vld [vmem:[%s3 + $0x8] sm:$0xff]
    %v155 = vld [vmem:[%s3 + $0x10] sm:$0xff]
    %v156 = vld [vmem:[%s3 + $0x18] sm:$0xff]
    %v157 = vld [vmem:[%s4] sm:$0xff]
    %v158 = vld [vmem:[%s4 + $0x8] sm:$0xff]
    %v159 = vld [vmem:[%s4 + $0x10] sm:$0xff]
    %v160 = vld [vmem:[%s4 + $0x18] sm:$0xff]
    %vm161 = vcmask 64512
    %v162 = vsel %vm161, %v139, 0.0
    %v163 = vsel %vm161, %v142, 0.0
    %v164 = vadd.f32 %v162, %v163
    %v165 = vsel %vm161, %v147, 0.0
    %v166 = vadd.f32 %v164, %v165
    %v167 = vsel %vm161, %v150, 0.0
    %v168 = vadd.f32 %v166, %v167
    %v169 = vrot.slane %v168, 4
    %v170 = vadd.f32 %v168, %v169
    %v171 = vrot.slane %v170, 2
    %v172 = vadd.f32 %v170, %v171
    %v173 = vrot.slane %v172, 1
    %v174 = vadd.f32 %v172, %v173
    %v175 = vrcp.pop 32.0
    %v176 = vmul.f32 %v174, %v175
    %v177 = vmul.f32 %v139, %v139
    %v178 = vmul.f32 %v142, %v142
    %v179 = vmul.f32 %v147, %v147
    %v180 = vmul.f32 %v150, %v150
    %v181 = vsel %vm161, %v177, 0.0
    %v182 = vsel %vm161, %v178, 0.0
    %v183 = vadd.f32 %v181, %v182
    %v184 = vsel %vm161, %v179, 0.0
    %v185 = vadd.f32 %v183, %v184
    %v186 = vsel %vm161, %v180, 0.0
    %v187 = vadd.f32 %v185, %v186
    %v188 = vrot.slane %v187, 4
    %v189 = vadd.f32 %v187, %v188
    %v190 = vrot.slane %v189, 2
    %v191 = vadd.f32 %v189, %v190
    %v192 = vrot.slane %v191, 1
    %v193 = vadd.f32 %v191, %v192
    %v194 = vmul.f32 %v193, %v175
    %v195 = vmul.f32 %v176, %v176
    %v196 = vsub.f32 %v194, %v195
    %v197 = vmax.f32 %v196, 0.0
    %v198 = vadd.f32 %v197, 1e-05
    %v199 = vrsqrt.pop %v198
    %v200 = vsub.f32 %v139, %v176
    %v201 = vsub.f32 %v142, %v176
    %v202 = vsub.f32 %v147, %v176
    %v203 = vsub.f32 %v150, %v176
    %v204 = vmul.f32 %v200, %v199
    %v205 = vmul.f32 %v201, %v199
    %v206 = vmul.f32 %v202, %v199
    %v207 = vmul.f32 %v203, %v199
    %209 = vset.pattern.permute.xlu0 0
    %210 = vperm.xlu0 %209, %v153
    %v211 = vpop.permute.xlu0 %210
    %214 = vset.pattern.permute.xlu0 0
    %215 = vperm.xlu0 %214, %v154
    %v216 = vpop.permute.xlu0 %215
    %219 = vset.pattern.permute.xlu0 0
    %220 = vperm.xlu0 %219, %v155
    %v221 = vpop.permute.xlu0 %220
    %224 = vset.pattern.permute.xlu0 0
    %225 = vperm.xlu0 %224, %v156
    %v226 = vpop.permute.xlu0 %225
    %v228 = vmul.f32 %v204, %v211
    %v229 = vmul.f32 %v205, %v216
    %v230 = vmul.f32 %v206, %v221
    %v231 = vmul.f32 %v207, %v226
    %233 = vset.pattern.permute.xlu0 0
    %234 = vperm.xlu0 %233, %v157
    %v235 = vpop.permute.xlu0 %234
    %238 = vset.pattern.permute.xlu0 0
    %239 = vperm.xlu0 %238, %v158
    %v240 = vpop.permute.xlu0 %239
    %243 = vset.pattern.permute.xlu0 0
    %244 = vperm.xlu0 %243, %v159
    %v245 = vpop.permute.xlu0 %244
    %248 = vset.pattern.permute.xlu0 0
    %249 = vperm.xlu0 %248, %v160
    %v250 = vpop.permute.xlu0 %249
    %v252 = vadd.f32 %v228, %v235
    %v253 = vadd.f32 %v229, %v240
    %v254 = vadd.f32 %v230, %v245
    %v255 = vadd.f32 %v231, %v250
    %v256 = vmax.f32 %v252, 0.0
    %v257 = vmax.f32 %v253, 0.0
    %v258 = vmax.f32 %v254, 0.0
    %v259 = vmax.f32 %v255, 0.0
    %v260 = vld [vmem:[%s5] sm:$0xf]
    %v261 = vld [vmem:[%s5 + $0x4] sm:$0xf]
    %v262 = vpack.c.bf16 %v257, %v256
    %v263 = vpack.c.bf16 %v259, %v258
    %v264 = vld [vmem:[%s6] sm:$0xff]
    %v265 = vld [vmem:[%s6 + $0x8] sm:$0xff]
    %267 = vset.pattern.permute.xlu0 0
    %268 = vperm.xlu0 %267, %v264
    %v269 = vpop.permute.xlu0 %268
    %272 = vset.pattern.permute.xlu0 0
    %273 = vperm.xlu0 %272, %v265
    %v274 = vpop.permute.xlu0 %273
    %v278 = vunpack.c.l.b16 %v260
    %v279 = vunpack.c.l.b16 %v261
    %v280 = vpack.c.b16 %v279, %v278
    %v282 = vsel %vm94, %v280, 0
    %284 = vmatprep.subr.bf16.mxu0 0
    %285 = vmatpush1.bf16.msra.mxu0 0
    %286 = vmatprep.subr.bf16.mxu0 0
    %287 = vmatpush1.bf16.msra.mxu0 0
    %288 = vmatprep.subr.bf16.mxu0 0
    %289 = vmatpush1.bf16.msra.mxu0 0
    %290 = vmatprep.subr.bf16.mxu0 0
    %291 = vmatpush1.bf16.msra.mxu0 0
    %292 = vmatprep.subr.bf16.mxu0 0
    %293 = vmatpush1.bf16.msra.mxu0 0
    %294 = vmatprep.subr.bf16.mxu0 0
    %295 = vmatpush1.bf16.msra.mxu0 0
    %296 = vmatprep.subr.bf16.mxu0 0
    %297 = vmatpush1.bf16.msra.mxu0 %v263
    %298 = vmatprep.subr.bf16.mxu0 0
    %299 = vmatpush1.bf16.msra.mxu0 %v262
    %300 = vmatprep.subr.bf16.mxu0 0
    %301 = vmatpush2.bf16.msra.mxu0 0
    %302 = vmatprep.subr.bf16.mxu0 0
    %303 = vmatpush2.bf16.msra.mxu0 0
    %304 = vmatprep.subr.bf16.mxu0 0
    %305 = vmatpush2.bf16.msra.mxu0 0
    %306 = vmatprep.subr.bf16.mxu0 0
    %307 = vmatpush2.bf16.msra.mxu0 0
    %308 = vmatprep.subr.bf16.mxu0 0
    %309 = vmatpush2.bf16.msra.mxu0 0
    %310 = vmatprep.subr.bf16.mxu0 0
    %311 = vmatpush2.bf16.msra.mxu0 0
    %312 = vmatprep.subr.bf16.mxu0 0
    %313 = vmatpush2.bf16.msra.mxu0 0
    %314 = vmatprep.subr.bf16.mxu0 0
    %315 = vmatpush2.bf16.msra.mxu0 0
    %316 = vmatprep.mubr.bf16.mxu0 0
    %317 = vmatmul.mubr.bf16.gmra.mxu0 %v282
    %v318 = vpop.f32.mrf.mxu0
    %v319 = vadd.f32 %v269, %v318
    %v320 = vpop.f32.mrf.mxu0
    %v321 = vpop.f32.mrf.mxu0
    %v322 = vadd.f32 %v274, %v321
    %v323 = vpop.f32.mrf.mxu0
    %324 = vdwg.mxu0
    %v325 = vld [vmem:[%s7] sm:$0xff]
    %v326 = vld [vmem:[%s7 + $0x8] sm:$0xff]
    %v327 = vld [vmem:[%s8] sm:$0xff]
    %v328 = vld [vmem:[%s8 + $0x8] sm:$0xff]
    %v329 = vsel %vm161, %v319, 0.0
    %v330 = vsel %vm161, %v322, 0.0
    %v331 = vadd.f32 %v329, %v330
    %v332 = vrot.slane %v331, 4
    %v333 = vadd.f32 %v331, %v332
    %v334 = vrot.slane %v333, 2
    %v335 = vadd.f32 %v333, %v334
    %v336 = vrot.slane %v335, 1
    %v337 = vadd.f32 %v335, %v336
    %v338 = vrcp.pop 16.0
    %v339 = vmul.f32 %v337, %v338
    %v340 = vmul.f32 %v319, %v319
    %v341 = vmul.f32 %v322, %v322
    %v342 = vsel %vm161, %v340, 0.0
    %v343 = vsel %vm161, %v341, 0.0
    %v344 = vadd.f32 %v342, %v343
    %v345 = vrot.slane %v344, 4
    %v346 = vadd.f32 %v344, %v345
    %v347 = vrot.slane %v346, 2
    %v348 = vadd.f32 %v346, %v347
    %v349 = vrot.slane %v348, 1
    %v350 = vadd.f32 %v348, %v349
    %v351 = vmul.f32 %v350, %v338
    %v352 = vmul.f32 %v339, %v339
    %v353 = vsub.f32 %v351, %v352
    %v354 = vmax.f32 %v353, 0.0
    %v355 = vadd.f32 %v354, 1e-05
    %v356 = vrsqrt.pop %v355
    %v357 = vsub.f32 %v319, %v339
    %v358 = vsub.f32 %v322, %v339
    %v359 = vmul.f32 %v357, %v356
    %v360 = vmul.f32 %v358, %v356
    %362 = vset.pattern.permute.xlu0 0
    %363 = vperm.xlu0 %362, %v325
    %v364 = vpop.permute.xlu0 %363
    %367 = vset.pattern.permute.xlu0 0
    %368 = vperm.xlu0 %367, %v326
    %v369 = vpop.permute.xlu0 %368
    %v371 = vmul.f32 %v359, %v364
    %v372 = vmul.f32 %v360, %v369
    %374 = vset.pattern.permute.xlu0 0
    %375 = vperm.xlu0 %374, %v327
    %v376 = vpop.permute.xlu0 %375
    %379 = vset.pattern.permute.xlu0 0
    %380 = vperm.xlu0 %379, %v328
    %v381 = vpop.permute.xlu0 %380
    %v383 = vadd.f32 %v371, %v376
    %v384 = vadd.f32 %v372, %v381
    %v385 = vmax.f32 %v383, 0.0
    %v386 = vmax.f32 %v384, 0.0
    %v387 = vld [vmem:[%s9] sm:$0xf]
    %v388 = vpack.c.bf16 %v386, %v385
    %v389 = vld [vmem:[%s10] sm:$0xff]
    %391 = vset.pattern.permute.xlu0 0
    %392 = vperm.xlu0 %391, %v389
    %v393 = vpop.permute.xlu0 %392
    %vm395 = vcmask 130048
    %v397 = vsel %vm395, %v387, 0
    %399 = vmatprep.subr.bf16.mxu0 0
    %400 = vmatpush1.bf16.msra.mxu0 0
    %401 = vmatprep.subr.bf16.mxu0 0
    %402 = vmatpush1.bf16.msra.mxu0 0
    %403 = vmatprep.subr.bf16.mxu0 0
    %404 = vmatpush1.bf16.msra.mxu0 0
    %405 = vmatprep.subr.bf16.mxu0 0
    %406 = vmatpush1.bf16.msra.mxu0 0
    %407 = vmatprep.subr.bf16.mxu0 0
    %408 = vmatpush1.bf16.msra.mxu0 0
    %409 = vmatprep.subr.bf16.mxu0 0
    %410 = vmatpush1.bf16.msra.mxu0 0
    %411 = vmatprep.subr.bf16.mxu0 0
    %412 = vmatpush1.bf16.msra.mxu0 0
    %413 = vmatprep.subr.bf16.mxu0 0
    %414 = vmatpush1.bf16.msra.mxu0 %v388
    %415 = vmatprep.subr.bf16.mxu0 0
    %416 = vmatpush2.bf16.msra.mxu0 0
    %417 = vmatprep.subr.bf16.mxu0 0
    %418 = vmatpush2.bf16.msra.mxu0 0
    %419 = vmatprep.subr.bf16.mxu0 0
    %420 = vmatpush2.bf16.msra.mxu0 0
    %421 = vmatprep.subr.bf16.mxu0 0
    %422 = vmatpush2.bf16.msra.mxu0 0
    %423 = vmatprep.subr.bf16.mxu0 0
    %424 = vmatpush2.bf16.msra.mxu0 0
    %425 = vmatprep.subr.bf16.mxu0 0
    %426 = vmatpush2.bf16.msra.mxu0 0
    %427 = vmatprep.subr.bf16.mxu0 0
    %428 = vmatpush2.bf16.msra.mxu0 0
    %429 = vmatprep.subr.bf16.mxu0 0
    %430 = vmatpush2.bf16.msra.mxu0 0
    %431 = vmatprep.mubr.bf16.mxu0 0
    %432 = vmatmul.mubr.bf16.gmra.mxu0 %v397
    %v433 = vpop.f32.mrf.mxu0
    %v434 = vadd.f32 %v393, %v433
    %v435 = vpop.f32.mrf.mxu0
    %v436 = vpop.f32.mrf.mxu0
    %v437 = vpop.f32.mrf.mxu0
    %438 = vdwg.mxu0
    %v439 = vld [vmem:[%s11] sm:$0xff]
    %v440 = vld [vmem:[%s12] sm:$0xff]
    %v441 = vsel %vm161, %v434, 0.0
    %v442 = vrot.slane %v441, 4
    %v443 = vadd.f32 %v441, %v442
    %v444 = vrot.slane %v443, 2
    %v445 = vadd.f32 %v443, %v444
    %v446 = vrot.slane %v445, 1
    %v447 = vadd.f32 %v445, %v446
    %v448 = vrcp.pop 8.0
    %v449 = vmul.f32 %v447, %v448
    %v450 = vmul.f32 %v434, %v434
    %v451 = vsel %vm161, %v450, 0.0
    %v452 = vrot.slane %v451, 4
    %v453 = vadd.f32 %v451, %v452
    %v454 = vrot.slane %v453, 2
    %v455 = vadd.f32 %v453, %v454
    %v456 = vrot.slane %v455, 1
    %v457 = vadd.f32 %v455, %v456
    %v458 = vmul.f32 %v457, %v448
    %v459 = vmul.f32 %v449, %v449
    %v460 = vsub.f32 %v458, %v459
    %v461 = vmax.f32 %v460, 0.0
    %v462 = vadd.f32 %v461, 1e-05
    %v463 = vrsqrt.pop %v462
    %v464 = vsub.f32 %v434, %v449
    %v465 = vmul.f32 %v464, %v463
    %467 = vset.pattern.permute.xlu0 0
    %468 = vperm.xlu0 %467, %v439
    %v469 = vpop.permute.xlu0 %468
    %v471 = vmul.f32 %v465, %v469
    %473 = vset.pattern.permute.xlu0 0
    %474 = vperm.xlu0 %473, %v440
    %v475 = vpop.permute.xlu0 %474
    %v477 = vadd.f32 %v471, %v475
    %v478 = vmax.f32 %v477, 0.0
    %v479 = vld [vmem:[%s13] sm:$0x1]
    %v480 = vpack.c.bf16 %v478, %v478
    %v481 = vld [vmem:[#allocation2] sm:$0x1]
    %483 = vset.pattern.permute.xlu0 0
    %484 = vperm.xlu0 %483, %v481
    %v485 = vpop.permute.xlu0 %484
    %v487 = vlaneseq
    %v488 = vshrl.u32 %v487, 7
    %v489 = vsub.s32 0, %v488
    %v490 = vrot.slane %v485, %v489
    %v492 = vsel %vm161, %v479, 0
    %vm494 = vcmask 1043456
    %v496 = vsel %vm494, %v480, 0
    %498 = vmatprep.subr.bf16.mxu0 0
    %499 = vmatpush1.bf16.msra.mxu0 0
    %500 = vmatprep.subr.bf16.mxu0 0
    %501 = vmatpush1.bf16.msra.mxu0 0
    %502 = vmatprep.subr.bf16.mxu0 0
    %503 = vmatpush1.bf16.msra.mxu0 0
    %504 = vmatprep.subr.bf16.mxu0 0
    %505 = vmatpush1.bf16.msra.mxu0 0
    %506 = vmatprep.subr.bf16.mxu0 0
    %507 = vmatpush1.bf16.msra.mxu0 0
    %508 = vmatprep.subr.bf16.mxu0 0
    %509 = vmatpush1.bf16.msra.mxu0 0
    %510 = vmatprep.subr.bf16.mxu0 0
    %511 = vmatpush1.bf16.msra.mxu0 0
    %512 = vmatprep.subr.bf16.mxu0 0
    %513 = vmatpush1.bf16.msra.mxu0 %v496
    %514 = vmatprep.subr.bf16.mxu0 0
    %515 = vmatpush2.bf16.msra.mxu0 0
    %516 = vmatprep.subr.bf16.mxu0 0
    %517 = vmatpush2.bf16.msra.mxu0 0
    %518 = vmatprep.subr.bf16.mxu0 0
    %519 = vmatpush2.bf16.msra.mxu0 0
    %520 = vmatprep.subr.bf16.mxu0 0
    %521 = vmatpush2.bf16.msra.mxu0 0
    %522 = vmatprep.subr.bf16.mxu0 0
    %523 = vmatpush2.bf16.msra.mxu0 0
    %524 = vmatprep.subr.bf16.mxu0 0
    %525 = vmatpush2.bf16.msra.mxu0 0
    %526 = vmatprep.subr.bf16.mxu0 0
    %527 = vmatpush2.bf16.msra.mxu0 0
    %528 = vmatprep.subr.bf16.mxu0 0
    %529 = vmatpush2.bf16.msra.mxu0 0
    %530 = vmatprep.mubr.bf16.mxu0 0
    %531 = vmatmul.mubr.bf16.gmra.mxu0 %v492
    %v532 = vpop.f32.mrf.mxu0
    %v533 = vadd.f32 %v490, %v532
    %v534 = vpop.f32.mrf.mxu0
    %v535 = vpop.f32.mrf.mxu0
    %v536 = vpop.f32.mrf.mxu0
    %537 = vdwg.mxu0
    %vm538 = vcmask 57344
    %539 = vst.msk [vmem:[#allocation3] sm:$0x1] %vm538, %v533
    // Predicated region
    $region62: #{tpa_prediction_head.1} parent=1 // pred_check
      _
    $region63: #{tpa_prediction_head.1} parent=1 // pred_check_branch
      %541 = sbr.rel (0) target = $region65
    $region64: #{tpa_prediction_head.1} parent=1 // pred_region
      %s543 = ssub.s32 16, 16
      %544 = vsyncadd [#allocation4], %s543
      %s546 = sshll.u32 [#allocation3], 4
      %s547 = int_to_ptr.vmem [resolvable:$true] %s546
      %549 = dma.vmem_to_hbm [thread:$0]  %s547, 16, %s15, [#allocation4]
    $region65: #{tpa_prediction_head.1} parent=1 // pred_fallthru
      _
    // Predicated region
    $region66: #{tpa_prediction_head.1} parent=1 // pred_check
      _
    $region67: #{tpa_prediction_head.1} parent=1 // pred_check_branch
      %551 = sbr.rel (0) target = $region69
    $region68: #{tpa_prediction_head.1} parent=1 // pred_region
      %552 = dma.done [#allocation4], 16
    $region69: #{tpa_prediction_head.1} parent=1 // pred_fallthru
      _
    %553 = vsyncpa [#allocation4], 1

</llo_original>
